<compile_context>
chip_gen: v7x
topology: tpu7x:2x2x1
jax: 0.10.0
libtpu: 0.0.40
codegen_flags: <defaults>
</compile_context>

<pallas_src>
import math

import jax
import jax.numpy as jnp
from jax.experimental import pallas as pl
from jax.experimental.pallas import tpu as pltpu


def _round_up(x, m):
    return ((x + m - 1) // m) * m


def _pick_tile(n_p, cap):
    """Largest multiple of 128 that is <= cap and divides n_p (n_p % 128 == 0)."""
    t = max(128, (min(cap, n_p) // 128) * 128)
    while n_p % t:
        t -= 128
    return t


def _pad_to(a, shape, dtype):
    """Zero-pad `a` to `shape` and cast to `dtype`; no-op copy avoided if possible."""
    if a.shape == tuple(shape):
        return a if a.dtype == dtype else a.astype(dtype)
    out = jnp.zeros(shape, dtype)
    return out.at[tuple(slice(0, s) for s in a.shape)].set(a.astype(dtype))


def _build_gcn_kernel(tk, sup_resident):
    def kernel(adj_ref, sup_ref, b_ref, s_ref, o_ref):
        k = pl.program_id(1)

        if sup_resident:
            start = pl.multiple_of(k * tk, tk)
            sup = sup_ref[pl.ds(start, tk), :]
        else:
            sup = sup_ref[...]

        # o[TM, F_out_p] (+)= adj_tile[TM, TK] @ support[TK, F_out_p]
        # adj streams narrow (bf16 by default); upcast is exact, accumulate f32.
        contrib = jnp.dot(adj_ref[...].astype(jnp.float32), sup,
                          preferred_element_type=jnp.float32)

        @pl.when(k == 0)
        def _():
            o_ref[...] = contrib          # first k writes: no zero-fill + RMW

        @pl.when(k != 0)
        def _():
            o_ref[...] += contrib

        @pl.when(k == pl.num_programs(1) - 1)
        def _():
            # Fused epilogue: optional per-row f32 scale (e.g. 1/deg) + bias.
            o_ref[...] = o_ref[...] * s_ref[...] + b_ref[...]

    return kernel


def graph_convolution(x, adj, weight, bias=None, *, row_scale=None,
                      adj_dtype=jnp.bfloat16, tm_cap=512, tk_cap=2048):
    """out[n, f_out] = diag(row_scale) @ (adj @ (x @ weight)) + bias.

    x: [N, F_in], adj: [N, N] dense, weight: [F_in, F_out], bias: [F_out]|None,
    row_scale: [N] or [N,1] or None.  `adj` is streamed through the kernel in
    `adj_dtype` (bf16 default; exact for {0,1} adjacencies — pass float32 for a
    pre-normalized adjacency if bit-level accuracy matters).
    """
    n, _ = x.shape
    f_out = weight.shape[1]
    f_out_p = _round_up(f_out, 128)
    n_p = _round_up(n, 128)

    tm = _pick_tile(n_p, tm_cap)
    if n_p // tm < 2 and n_p >= 256:
        tm = _pick_tile(n_p, n_p // 2)   # >=2 row tiles -> both v7x TensorCores busy
    tk = _pick_tile(n_p, tk_cap)

    # Tiny support matmul (torch.mm(input, weight)) done in plain XLA, f32.
    support = jnp.dot(x.astype(jnp.float32), weight.astype(jnp.float32),
                      preferred_element_type=jnp.float32)

    adj_p = _pad_to(adj, (n_p, n_p), adj_dtype)
    sup_p = _pad_to(support, (n_p, f_out_p), jnp.float32)

    b_vec = bias if bias is not None else jnp.zeros((f_out,), jnp.float32)
    b_p = _pad_to(b_vec.astype(jnp.float32).reshape(1, f_out), (1, f_out_p),
                  jnp.float32)

    if row_scale is None:
        s_p = jnp.ones((n_p, 1), jnp.float32)
    else:
        s_p = jnp.ones((n_p, 1), jnp.float32).at[:n, 0].set(
            row_scale.reshape(-1).astype(jnp.float32))

    # Keep support fully VMEM-resident when small enough (one-time DMA);
    # budget conservatively so the config also fits v7x's 64 MiB VMEM.
    sup_bytes = n_p * f_out_p * 4
    sup_resident = sup_bytes <= 8 * 1024 * 1024
    if sup_resident:
        sup_spec = pl.BlockSpec((n_p, f_out_p), lambda i, k: (0, 0))
    else:
        sup_spec = pl.BlockSpec((tk, f_out_p), lambda i, k: (k, 0))

    adj_item = jnp.dtype(adj_dtype).itemsize
    need = (2 * tm * tk * adj_item                                   # adj (dbl-buf)
            + (2 * sup_bytes if sup_resident else 2 * tk * f_out_p * 4)
            + 2 * tm * f_out_p * 4                                   # out tile
            + 4 * (tm + f_out_p) * 4)                                # bias/scale slop
    vmem_limit = min(48 * 1024 * 1024, max(32 * 1024 * 1024, int(need * 1.5)))

    grid = (n_p // tm, n_p // tk)

    out_p = pl.pallas_call(
        _build_gcn_kernel(tk, sup_resident),
        out_shape=jax.ShapeDtypeStruct((n_p, f_out_p), jnp.float32),
        grid_spec=pltpu.PrefetchScalarGridSpec(
            num_scalar_prefetch=0,
            grid=grid,
            in_specs=[
                pl.BlockSpec((tm, tk), lambda i, k: (i, k)),       # adj stream
                sup_spec,                                          # support
                pl.BlockSpec((1, f_out_p), lambda i, k: (0, 0)),   # bias (resident)
                pl.BlockSpec((tm, 1), lambda i, k: (i, 0)),        # per-row scale
            ],
            out_specs=pl.BlockSpec((tm, f_out_p), lambda i, k: (i, 0)),
        ),
        compiler_params=pltpu.CompilerParams(
            dimension_semantics=("parallel", "arbitrary"),
            vmem_limit_bytes=vmem_limit,
        ),
    )(adj_p, sup_p, b_p, s_p)

    return out_p[:n, :f_out]


def init_params(key, in_features, out_features):
    """Mirrors reset_parameters_uniform: U(-stdv, stdv), stdv = 1/sqrt(out_features)."""
    stdv = 1.0 / math.sqrt(out_features)
    kw, kb = jax.random.split(key)
    weight = jax.random.uniform(kw, (in_features, out_features),
                                minval=-stdv, maxval=stdv, dtype=jnp.float32)
    bias = jax.random.uniform(kb, (out_features,),
                              minval=-stdv, maxval=stdv, dtype=jnp.float32)
    return weight, bias


if __name__ == "__main__":
    key = jax.random.PRNGKey(0)
    k_x, k_adj, k_p = jax.random.split(key, 3)

    N = 16
    IN_FEATURES = 8
    OUT_FEATURES = 32

    x = jax.random.normal(k_x, (N, IN_FEATURES), dtype=jnp.float32)

    # {0,1} adjacency with self loops (exact in bf16); GCN row-normalization
    # 1/deg is folded into the kernel epilogue as an f32 per-row scale.
    adj01 = (jax.random.uniform(k_adj, (N, N)) > 0.7).astype(jnp.float32)
    adj01 = jnp.maximum(adj01, jnp.eye(N, dtype=jnp.float32))
    deg = jnp.sum(adj01, axis=1, keepdims=True)
    adj_norm = adj01 / deg                      # what the PyTorch module would receive

    weight, bias = init_params(k_p, IN_FEATURES, OUT_FEATURES)

    # Fast path: bf16 {0,1} adjacency stream + exact f32 1/deg epilogue scale.
    out = graph_convolution(x, adj01, weight, bias, row_scale=1.0 / deg)
    # Literal-module path: pre-normalized adjacency streamed in f32.
    out_f32 = graph_convolution(x, adj_norm, weight, bias,
                                adj_dtype=jnp.float32)
    jax.block_until_ready((out, out_f32))

    # Reference (original PyTorch association order).
    ref = adj_norm @ (x @ weight) + bias
    assert out.shape == (N, OUT_FEATURES)
    assert jnp.allclose(out, ref, atol=1e-4, rtol=1e-4)
    assert jnp.allclose(out_f32, ref, atol=1e-4, rtol=1e-4)

    print("KERNEL_OK")
</pallas_src>

<mosaic_0001>
module attributes {stable_mosaic.version = 11 : i64} {
  func.func @kernel(%arg0: i32, %arg1: i32, %arg2: memref<128x128xbf16, #tpu.memory_space<vmem>>, %arg3: memref<128x128xf32, #tpu.memory_space<vmem>>, %arg4: memref<1x128xf32, #tpu.memory_space<vmem>>, %arg5: memref<128x1xf32, #tpu.memory_space<vmem>>, %arg6: memref<128x128xf32, #tpu.memory_space<vmem>>) attributes {dimension_semantics = [#tpu.dimension_semantics<parallel>, #tpu.dimension_semantics<arbitrary>], iteration_bounds = array<i64: 1, 1>, scalar_prefetch = 0 : i64, scratch_operands = 0 : i64, tpu.core_type = #tpu.core_type<tc>, window_params = [{transform_indices = @transform_0, window_bounds = array<i64: 128, 128>}, {pipeline_mode = #tpu.pipeline_mode<synchronous>, transform_indices = @transform_1, window_bounds = array<i64: 128, 128>}, {pipeline_mode = #tpu.pipeline_mode<synchronous>, transform_indices = @transform_2, window_bounds = array<i64: 1, 128>}, {transform_indices = @transform_3, window_bounds = array<i64: 128, 1>}, {transform_indices = @transform_4, window_bounds = array<i64: 128, 128>}]} {
    %c128_i32 = arith.constant 128 : i32
    %0 = arith.muli %arg1, %c128_i32 : i32
    %1 = tpu.assume_multiple %0, 128 : i32
    %2 = arith.index_cast %1 : i32 to index
    %c0 = arith.constant 0 : index
    %3 = vector.load %arg3[%2, %c0] : memref<128x128xf32, #tpu.memory_space<vmem>>, vector<128x128xf32>
    %c0_0 = arith.constant 0 : index
    %c0_1 = arith.constant 0 : index
    %4 = vector.load %arg2[%c0_0, %c0_1] : memref<128x128xbf16, #tpu.memory_space<vmem>>, vector<128x128xbf16>
    %5 = arith.extf %4 : vector<128x128xbf16> to vector<128x128xf32>
    %cst = arith.constant dense<0.000000e+00> : vector<128x128xf32>
    %6 = tpu.matmul %5, %3, %cst {dimension_numbers = #tpu.dot_dimension_numbers<[1], [0], [0], [1], [0, 0, 1, 1], [], []>} : vector<128x128xf32>, vector<128x128xf32>, vector<128x128xf32> -> vector<128x128xf32>
    %c0_i32 = arith.constant 0 : i32
    %7 = arith.cmpi eq, %arg1, %c0_i32 : i32
    %8 = arith.extui %7 : i1 to i32
    %c0_i32_2 = arith.constant 0 : i32
    %9 = arith.cmpi ne, %8, %c0_i32_2 : i32
    scf.if %9 {
      %c0_7 = arith.constant 0 : index
      %c0_8 = arith.constant 0 : index
      %16 = vector.load %arg6[%c0_7, %c0_8] : memref<128x128xf32, #tpu.memory_space<vmem>>, vector<128x128xf32>
      tpu.vector_store %arg6[%c0_7, %c0_8], %6 {strides = array<i32>} : memref<128x128xf32, #tpu.memory_space<vmem>>, vector<128x128xf32>,
    } else {
    }
    %c0_i32_3 = arith.constant 0 : i32
    %10 = arith.cmpi ne, %arg1, %c0_i32_3 : i32
    %11 = arith.extui %10 : i1 to i32
    %c0_i32_4 = arith.constant 0 : i32
    %12 = arith.cmpi ne, %11, %c0_i32_4 : i32
    scf.if %12 {
      %c0_7 = arith.constant 0 : index
      %c0_8 = arith.constant 0 : index
      %16 = vector.load %arg6[%c0_7, %c0_8] : memref<128x128xf32, #tpu.memory_space<vmem>>, vector<128x128xf32>
      %17 = arith.addf %16, %6 : vector<128x128xf32>
      %c0_9 = arith.constant 0 : index
      %c0_10 = arith.constant 0 : index
      %18 = vector.load %arg6[%c0_9, %c0_10] : memref<128x128xf32, #tpu.memory_space<vmem>>, vector<128x128xf32>
      tpu.vector_store %arg6[%c0_9, %c0_10], %17 {strides = array<i32>} : memref<128x128xf32, #tpu.memory_space<vmem>>, vector<128x128xf32>,
    } else {
    }
    %c0_i32_5 = arith.constant 0 : i32
    %13 = arith.cmpi eq, %arg1, %c0_i32_5 : i32
    %14 = arith.extui %13 : i1 to i32
    %c0_i32_6 = arith.constant 0 : i32
    %15 = arith.cmpi ne, %14, %c0_i32_6 : i32
    scf.if %15 {
      %c0_7 = arith.constant 0 : index
      %c0_8 = arith.constant 0 : index
      %16 = vector.load %arg6[%c0_7, %c0_8] : memref<128x128xf32, #tpu.memory_space<vmem>>, vector<128x128xf32>
      %c0_9 = arith.constant 0 : index
      %c0_10 = arith.constant 0 : index
      %17 = vector.load %arg5[%c0_9, %c0_10] : memref<128x1xf32, #tpu.memory_space<vmem>>, vector<128x1xf32>
      %18 = vector.broadcast %17 : vector<128x1xf32> to vector<128x128xf32>
      %19 = arith.mulf %16, %18 : vector<128x128xf32>
      %c0_11 = arith.constant 0 : index
      %c0_12 = arith.constant 0 : index
      %20 = vector.load %arg4[%c0_11, %c0_12] : memref<1x128xf32, #tpu.memory_space<vmem>>, vector<1x128xf32>
      %21 = vector.broadcast %20 : vector<1x128xf32> to vector<128x128xf32>
      %22 = arith.addf %19, %21 : vector<128x128xf32>
      %c0_13 = arith.constant 0 : index
      %c0_14 = arith.constant 0 : index
      %23 = vector.load %arg6[%c0_13, %c0_14] : memref<128x128xf32, #tpu.memory_space<vmem>>, vector<128x128xf32>
      tpu.vector_store %arg6[%c0_13, %c0_14], %22 {strides = array<i32>} : memref<128x128xf32, #tpu.memory_space<vmem>>, vector<128x128xf32>,
    } else {
    }
    return
  }
  func.func @transform_0(%arg0: i32, %arg1: i32) -> (i32, i32) {
    %c0_i32 = arith.constant 0 : i32
    return %arg0, %arg1 : i32, i32
  }
  func.func @transform_1(%arg0: i32, %arg1: i32) -> (i32, i32) {
    %c0_i32 = arith.constant 0 : i32
    %c0_i32_0 = arith.constant 0 : i32
    %c0_i32_1 = arith.constant 0 : i32
    return %c0_i32, %c0_i32_0 : i32, i32
  }
  func.func @transform_2(%arg0: i32, %arg1: i32) -> (i32, i32) {
    %c0_i32 = arith.constant 0 : i32
    %c0_i32_0 = arith.constant 0 : i32
    %c0_i32_1 = arith.constant 0 : i32
    return %c0_i32, %c0_i32_0 : i32, i32
  }
  func.func @transform_3(%arg0: i32, %arg1: i32) -> (i32, i32) {
    %c0_i32 = arith.constant 0 : i32
    %c0_i32_0 = arith.constant 0 : i32
    return %arg0, %c0_i32 : i32, i32
  }
  func.func @transform_4(%arg0: i32, %arg1: i32) -> (i32, i32) {
    %c0_i32 = arith.constant 0 : i32
    %c0_i32_0 = arith.constant 0 : i32
    return %arg0, %c0_i32 : i32, i32
  }
}

</mosaic_0001>

<llo_original>
// kernel: tpu_custom_call.1
$region0: #{tpu_custom_call.1}
  #allocation0 [shape = 'u32[]', space=smem, size = 0x4, offset = 0x4, fixed_abs, tag = 'smem constant byte address 0x4 - core index']
  #allocation1 [shape = 'u32[144,128]{1,0:T(1,128)}', space=vmem, size = 0x12000, scoped, tag = 'internal scratch']
  %s0 = inlined_call_operand.hbm [shape: bf16[128,128], index: 0, kind: input, shape index: {}]
  %s1 = inlined_call_operand.vmem [shape: f32[128,128], index: 1, kind: input, shape index: {}]
  %s2 = inlined_call_operand.vmem [shape: f32[1,128], index: 2, kind: input, shape index: {}]
  %s3 = inlined_call_operand.vmem [shape: f32[128,1], index: 3, kind: input, shape index: {}]
  %s4 = inlined_call_operand.hbm [shape: f32[128,128], index: 4, kind: output, shape index: {}]
  %s5 = sld [smem:[#allocation0]]
  $region42: #{tpu_custom_call.1} parent=0
    _
  %s7 = ssub.s32 1, %s5
  %s8 = scalar_select 0, %s7, %s5
  $region1: #{tpu_custom_call.1} parent=0
    #allocation2 [shape = 'u8[32768]{0}', space=vmem, size = 0x8000, scoped, tag = 'input window, operand 0, single buffered']
    #allocation3 [shape = 's32[1]{0}', space=sflag, size = 0x4, scoped, tag = 'scoped memory for tpu_custom_call.1']
    #allocation4 [shape = 's32[1]{0}', space=sflag, size = 0x4, scoped, tag = 'scoped memory for tpu_custom_call.1']
    #allocation5 [shape = 'u8[65536]{0}', space=vmem, size = 0x10000, scoped, tag = 'output window, operand 0, single buffered']
    %9 = vsyncpa [#allocation3], 0
    %10 = vsyncpa [#allocation4], 0
    // Predicated region
    $region2: #{tpu_custom_call.1} parent=1 // pred_check
      _
    $region3: #{tpu_custom_call.1} parent=1 // pred_check_branch
      %12 = sbr.rel (0) target = $region5
    $region4: #{tpu_custom_call.1} parent=1 // pred_region
      %s14 = ssub.s32 1024, 1024
      %15 = vsyncadd [#allocation3], %s14
      %s16 = sshll.u32 [#allocation2], 4
      %s17 = int_to_ptr.vmem [resolvable:$true] %s16
      %22 = dma.hbm_to_vmem [thread:$0]  %s0, 1024, %s17, [#allocation3], 64, 64, 4
    $region5: #{tpu_custom_call.1} parent=1 // pred_fallthru
      _
    // Predicated region
    $region6: #{tpu_custom_call.1} parent=1 // pred_check
      _
    $region7: #{tpu_custom_call.1} parent=1 // pred_check_branch
      %24 = sbr.rel (0) target = $region9
    $region8: #{tpu_custom_call.1} parent=1 // pred_region
      _
    $region9: #{tpu_custom_call.1} parent=1 // pred_fallthru
      _
    // Predicated region
    $region10: #{tpu_custom_call.1} parent=1 // pred_check
      _
    $region11: #{tpu_custom_call.1} parent=1 // pred_check_branch
      %26 = sbr.rel (0) target = $region13
    $region12: #{tpu_custom_call.1} parent=1 // pred_region
      _
    $region13: #{tpu_custom_call.1} parent=1 // pred_fallthru
      _
    // Predicated region
    $region14: #{tpu_custom_call.1} parent=1 // pred_check
      _
    $region15: #{tpu_custom_call.1} parent=1 // pred_check_branch
      %28 = sbr.rel (0) target = $region17
    $region16: #{tpu_custom_call.1} parent=1 // pred_region
      _
    $region17: #{tpu_custom_call.1} parent=1 // pred_fallthru
      _
    // Predicated region
    $region18: #{tpu_custom_call.1} parent=1 // pred_check
      _
    $region19: #{tpu_custom_call.1} parent=1 // pred_check_branch
      %30 = sbr.rel (0) target = $region21
    $region20: #{tpu_custom_call.1} parent=1 // pred_region
      %31 = dma.done [#allocation3], 1024
    $region21: #{tpu_custom_call.1} parent=1 // pred_fallthru
      _
    %s32 = smul.u32 0, 128
    %s33 = scalar_lea.vmem %s1, %s32
    %v34 = vld [vmem:[%s33] sm:$0xff]
    %v35 = vld [vmem:[%s33 + $0x8] sm:$0xff]
    %v36 = vld [vmem:[%s33 + $0x10] sm:$0xff]
    %v37 = vld [vmem:[%s33 + $0x18] sm:$0xff]
    %v38 = vld [vmem:[%s33 + $0x20] sm:$0xff]
    %v39 = vld [vmem:[%s33 + $0x28] sm:$0xff]
    %v40 = vld [vmem:[%s33 + $0x30] sm:$0xff]
    %v41 = vld [vmem:[%s33 + $0x38] sm:$0xff]
    %v42 = vld [vmem:[%s33 + $0x40] sm:$0xff]
    %v43 = vld [vmem:[%s33 + $0x48] sm:$0xff]
    %v44 = vld [vmem:[%s33 + $0x50] sm:$0xff]
    %v45 = vld [vmem:[%s33 + $0x58] sm:$0xff]
    %v46 = vld [vmem:[%s33 + $0x60] sm:$0xff]
    %v47 = vld [vmem:[%s33 + $0x68] sm:$0xff]
    %v48 = vld [vmem:[%s33 + $0x70] sm:$0xff]
    %v49 = vld [vmem:[%s33 + $0x78] sm:$0xff]
    %v50 = vld [vmem:[#allocation2] sm:$0xf]
    %v51 = vld [vmem:[#allocation2 + $0x4] sm:$0xf]
    %v52 = vld [vmem:[#allocation2 + $0x8] sm:$0xf]
    %v53 = vld [vmem:[#allocation2 + $0xc] sm:$0xf]
    %v54 = vld [vmem:[#allocation2 + $0x10] sm:$0xf]
    %v55 = vld [vmem:[#allocation2 + $0x14] sm:$0xf]
    %v56 = vld [vmem:[#allocation2 + $0x18] sm:$0xf]
    %v57 = vld [vmem:[#allocation2 + $0x1c] sm:$0xf]
    %v58 = vld [vmem:[#allocation2 + $0x20] sm:$0xf]
    %v59 = vld [vmem:[#allocation2 + $0x24] sm:$0xf]
    %v60 = vld [vmem:[#allocation2 + $0x28] sm:$0xf]
    %v61 = vld [vmem:[#allocation2 + $0x2c] sm:$0xf]
    %v62 = vld [vmem:[#allocation2 + $0x30] sm:$0xf]
    %v63 = vld [vmem:[#allocation2 + $0x34] sm:$0xf]
    %v64 = vld [vmem:[#allocation2 + $0x38] sm:$0xf]
    %v65 = vld [vmem:[#allocation2 + $0x3c] sm:$0xf]
    %v66 = vunpack.c.l.bf16 %v50
    %v67 = vunpack.c.l.bf16 %v51
    %v68 = vunpack.c.l.bf16 %v52
    %v69 = vunpack.c.l.bf16 %v53
    %v70 = vunpack.c.l.bf16 %v54
    %v71 = vunpack.c.l.bf16 %v55
    %v72 = vunpack.c.l.bf16 %v56
    %v73 = vunpack.c.l.bf16 %v57
    %v74 = vunpack.c.l.bf16 %v58
    %v75 = vunpack.c.l.bf16 %v59
    %v76 = vunpack.c.l.bf16 %v60
    %v77 = vunpack.c.l.bf16 %v61
    %v78 = vunpack.c.l.bf16 %v62
    %v79 = vunpack.c.l.bf16 %v63
    %v80 = vunpack.c.l.bf16 %v64
    %v81 = vunpack.c.l.bf16 %v65
    %82 = vmatprep.subr.mxu0 0.0
    %83 = vmatpush1.msra.mxu0 %v34
    %84 = vmatprep.subr.mxu0 0.0
    %85 = vmatpush1.msra.mxu0 %v35
    %86 = vmatprep.subr.mxu0 0.0
    %87 = vmatpush1.msra.mxu0 %v36
    %88 = vmatprep.subr.mxu0 0.0
    %89 = vmatpush1.msra.mxu0 %v37
    %90 = vmatprep.subr.mxu0 0.0
    %91 = vmatpush1.msra.mxu0 %v38
    %92 = vmatprep.subr.mxu0 0.0
    %93 = vmatpush1.msra.mxu0 %v39
    %94 = vmatprep.subr.mxu0 0.0
    %95 = vmatpush1.msra.mxu0 %v40
    %96 = vmatprep.subr.mxu0 0.0
    %97 = vmatpush1.msra.mxu0 %v41
    %98 = vmatprep.subr.mxu0 0.0
    %99 = vmatpush1.msra.mxu0 %v42
    %100 = vmatprep.subr.mxu0 0.0
    %101 = vmatpush1.msra.mxu0 %v43
    %102 = vmatprep.subr.mxu0 0.0
    %103 = vmatpush1.msra.mxu0 %v44
    %104 = vmatprep.subr.mxu0 0.0
    %105 = vmatpush1.msra.mxu0 %v45
    %106 = vmatprep.subr.mxu0 0.0
    %107 = vmatpush1.msra.mxu0 %v46
    %108 = vmatprep.subr.mxu0 0.0
    %109 = vmatpush1.msra.mxu0 %v47
    %110 = vmatprep.subr.mxu0 0.0
    %111 = vmatpush1.msra.mxu0 %v48
    %112 = vmatprep.subr.mxu0 0.0
    %113 = vmatpush1.msra.mxu0 %v49
    %114 = vmatprep.subr.mxu0 0.0
    %115 = vmatpush1.msra.mxu0 0.0
    %116 = vmatprep.subr.mxu0 0.0
    %117 = vmatpush1.msra.mxu0 0.0
    %118 = vmatprep.subr.mxu0 0.0
    %119 = vmatpush1.msra.mxu0 0.0
    %120 = vmatprep.subr.mxu0 0.0
    %121 = vmatpush1.msra.mxu0 0.0
    %122 = vmatprep.subr.mxu0 0.0
    %123 = vmatpush1.msra.mxu0 0.0
    %124 = vmatprep.subr.mxu0 0.0
    %125 = vmatpush1.msra.mxu0 0.0
    %126 = vmatprep.subr.mxu0 0.0
    %127 = vmatpush1.msra.mxu0 0.0
    %128 = vmatprep.subr.mxu0 0.0
    %129 = vmatpush1.msra.mxu0 0.0
    %130 = vmatprep.subr.mxu0 0.0
    %131 = vmatpush1.msra.mxu0 0.0
    %132 = vmatprep.subr.mxu0 0.0
    %133 = vmatpush1.msra.mxu0 0.0
    %134 = vmatprep.subr.mxu0 0.0
    %135 = vmatpush1.msra.mxu0 0.0
    %136 = vmatprep.subr.mxu0 0.0
    %137 = vmatpush1.msra.mxu0 0.0
    %138 = vmatprep.subr.mxu0 0.0
    %139 = vmatpush1.msra.mxu0 0.0
    %140 = vmatprep.subr.mxu0 0.0
    %141 = vmatpush1.msra.mxu0 0.0
    %142 = vmatprep.subr.mxu0 0.0
    %143 = vmatpush1.msra.mxu0 0.0
    %144 = vmatprep.subr.mxu0 0.0
    %145 = vmatpush1.msra.mxu0 0.0
    %146 = vmatprep.mubr.f32.mxu0 0.0
    %147 = vmatmul.mubr.f32.gmra.mrb[0].mxu0 %v66
    %v148 = vpop.f32.mrb[0].mxu0
    %v149 = vadd.f32 0.0, %v148
    %v150 = vpop.f32.mrb[0].mxu0
    %151 = vmatprep.mubr.f32.mxu0 0.0
    %152 = vmatmul.mubr.f32.gmra.mrb[0].mxu0 %v67
    %v153 = vpop.f32.mrb[0].mxu0
    %v154 = vadd.f32 0.0, %v153
    %v155 = vpop.f32.mrb[0].mxu0
    %156 = vmatprep.mubr.f32.mxu0 0.0
    %157 = vmatmul.mubr.f32.gmra.mrb[0].mxu0 %v68
    %v158 = vpop.f32.mrb[0].mxu0
    %v159 = vadd.f32 0.0, %v158
    %v160 = vpop.f32.mrb[0].mxu0
    %161 = vmatprep.mubr.f32.mxu0 0.0
    %162 = vmatmul.mubr.f32.gmra.mrb[0].mxu0 %v69
    %v163 = vpop.f32.mrb[0].mxu0
    %v164 = vadd.f32 0.0, %v163
    %v165 = vpop.f32.mrb[0].mxu0
    %166 = vmatprep.mubr.f32.mxu0 0.0
    %167 = vmatmul.mubr.f32.gmra.mrb[0].mxu0 %v70
    %v168 = vpop.f32.mrb[0].mxu0
    %v169 = vadd.f32 0.0, %v168
    %v170 = vpop.f32.mrb[0].mxu0
    %171 = vmatprep.mubr.f32.mxu0 0.0
    %172 = vmatmul.mubr.f32.gmra.mrb[0].mxu0 %v71
    %v173 = vpop.f32.mrb[0].mxu0
    %v174 = vadd.f32 0.0, %v173
    %v175 = vpop.f32.mrb[0].mxu0
    %176 = vmatprep.mubr.f32.mxu0 0.0
    %177 = vmatmul.mubr.f32.gmra.mrb[0].mxu0 %v72
    %v178 = vpop.f32.mrb[0].mxu0
    %v179 = vadd.f32 0.0, %v178
    %v180 = vpop.f32.mrb[0].mxu0
    %181 = vmatprep.mubr.f32.mxu0 0.0
    %182 = vmatmul.mubr.f32.gmra.mrb[0].mxu0 %v73
    %v183 = vpop.f32.mrb[0].mxu0
    %v184 = vadd.f32 0.0, %v183
    %v185 = vpop.f32.mrb[0].mxu0
    %186 = vmatprep.mubr.f32.mxu0 0.0
    %187 = vmatmul.mubr.f32.gmra.mrb[0].mxu0 %v74
    %v188 = vpop.f32.mrb[0].mxu0
    %v189 = vadd.f32 0.0, %v188
    %v190 = vpop.f32.mrb[0].mxu0
    %191 = vmatprep.mubr.f32.mxu0 0.0
    %192 = vmatmul.mubr.f32.gmra.mrb[0].mxu0 %v75
    %v193 = vpop.f32.mrb[0].mxu0
    %v194 = vadd.f32 0.0, %v193
    %v195 = vpop.f32.mrb[0].mxu0
    %196 = vmatprep.mubr.f32.mxu0 0.0
    %197 = vmatmul.mubr.f32.gmra.mrb[0].mxu0 %v76
    %v198 = vpop.f32.mrb[0].mxu0
    %v199 = vadd.f32 0.0, %v198
    %v200 = vpop.f32.mrb[0].mxu0
    %201 = vmatprep.mubr.f32.mxu0 0.0
    %202 = vmatmul.mubr.f32.gmra.mrb[0].mxu0 %v77
    %v203 = vpop.f32.mrb[0].mxu0
    %v204 = vadd.f32 0.0, %v203
    %v205 = vpop.f32.mrb[0].mxu0
    %206 = vmatprep.mubr.f32.mxu0 0.0
    %207 = vmatmul.mubr.f32.gmra.mrb[0].mxu0 %v78
    %v208 = vpop.f32.mrb[0].mxu0
    %v209 = vadd.f32 0.0, %v208
    %v210 = vpop.f32.mrb[0].mxu0
    %211 = vmatprep.mubr.f32.mxu0 0.0
    %212 = vmatmul.mubr.f32.gmra.mrb[0].mxu0 %v79
    %v213 = vpop.f32.mrb[0].mxu0
    %v214 = vadd.f32 0.0, %v213
    %v215 = vpop.f32.mrb[0].mxu0
    %216 = vmatprep.mubr.f32.mxu0 0.0
    %217 = vmatmul.mubr.f32.gmra.mrb[0].mxu0 %v80
    %v218 = vpop.f32.mrb[0].mxu0
    %v219 = vadd.f32 0.0, %v218
    %v220 = vpop.f32.mrb[0].mxu0
    %221 = vmatprep.mubr.f32.mxu0 0.0
    %222 = vmatmul.mubr.f32.gmra.mrb[0].mxu0 %v81
    %v223 = vpop.f32.mrb[0].mxu0
    %v224 = vadd.f32 0.0, %v223
    %v225 = vpop.f32.mrb[0].mxu0
    %226 = vdwg.mxu0
    %p227 = scmp.eq.s32.totalorder 0, 0
    // Predicated region
    $region22: #{tpu_custom_call.1} parent=1 // pred_check
      %p228 = pneg %p227
    $region23: #{tpu_custom_call.1} parent=1 // pred_check_branch
      %230 = sbr.rel (%p228) target = $region25
    $region24: #{tpu_custom_call.1} parent=1 // pred_region
      %231 = vst [vmem:[#allocation5] sm:$0xff] %v149
      %232 = vst [vmem:[#allocation5 + $0x8] sm:$0xff] %v154
      %233 = vst [vmem:[#allocation5 + $0x10] sm:$0xff] %v159
      %234 = vst [vmem:[#allocation5 + $0x18] sm:$0xff] %v164
      %235 = vst [vmem:[#allocation5 + $0x20] sm:$0xff] %v169
      %236 = vst [vmem:[#allocation5 + $0x28] sm:$0xff] %v174
      %237 = vst [vmem:[#allocation5 + $0x30] sm:$0xff] %v179
      %238 = vst [vmem:[#allocation5 + $0x38] sm:$0xff] %v184
      %239 = vst [vmem:[#allocation5 + $0x40] sm:$0xff] %v189
      %240 = vst [vmem:[#allocation5 + $0x48] sm:$0xff] %v194
      %241 = vst [vmem:[#allocation5 + $0x50] sm:$0xff] %v199
      %242 = vst [vmem:[#allocation5 + $0x58] sm:$0xff] %v204
      %243 = vst [vmem:[#allocation5 + $0x60] sm:$0xff] %v209
      %244 = vst [vmem:[#allocation5 + $0x68] sm:$0xff] %v214
      %245 = vst [vmem:[#allocation5 + $0x70] sm:$0xff] %v219
      %246 = vst [vmem:[#allocation5 + $0x78] sm:$0xff] %v224
    $region25: #{tpu_custom_call.1} parent=1 // pred_fallthru
      _
    %p247 = scmp.ne.s32.totalorder 0, 0
    // Predicated region
    $region26: #{tpu_custom_call.1} parent=1 // pred_check
      %p248 = pneg %p247
    $region27: #{tpu_custom_call.1} parent=1 // pred_check_branch
      %250 = sbr.rel (%p248) target = $region29
    $region28: #{tpu_custom_call.1} parent=1 // pred_region
      %v251 = vld [vmem:[#allocation5] sm:$0xff]
      %v252 = vld [vmem:[#allocation5 + $0x8] sm:$0xff]
      %v253 = vld [vmem:[#allocation5 + $0x10] sm:$0xff]
      %v254 = vld [vmem:[#allocation5 + $0x18] sm:$0xff]
      %v255 = vld [vmem:[#allocation5 + $0x20] sm:$0xff]
      %v256 = vld [vmem:[#allocation5 + $0x28] sm:$0xff]
      %v257 = vld [vmem:[#allocation5 + $0x30] sm:$0xff]
      %v258 = vld [vmem:[#allocation5 + $0x38] sm:$0xff]
      %v259 = vld [vmem:[#allocation5 + $0x40] sm:$0xff]
      %v260 = vld [vmem:[#allocation5 + $0x48] sm:$0xff]
      %v261 = vld [vmem:[#allocation5 + $0x50] sm:$0xff]
      %v262 = vld [vmem:[#allocation5 + $0x58] sm:$0xff]
      %v263 = vld [vmem:[#allocation5 + $0x60] sm:$0xff]
      %v264 = vld [vmem:[#allocation5 + $0x68] sm:$0xff]
      %v265 = vld [vmem:[#allocation5 + $0x70] sm:$0xff]
      %v266 = vld [vmem:[#allocation5 + $0x78] sm:$0xff]
      %v267 = vadd.f32 %v251, %v149
      %v268 = vadd.f32 %v252, %v154
      %v269 = vadd.f32 %v253, %v159
      %v270 = vadd.f32 %v254, %v164
      %v271 = vadd.f32 %v255, %v169
      %v272 = vadd.f32 %v256, %v174
      %v273 = vadd.f32 %v257, %v179
      %v274 = vadd.f32 %v258, %v184
      %v275 = vadd.f32 %v259, %v189
      %v276 = vadd.f32 %v260, %v194
      %v277 = vadd.f32 %v261, %v199
      %v278 = vadd.f32 %v262, %v204
      %v279 = vadd.f32 %v263, %v209
      %v280 = vadd.f32 %v264, %v214
      %v281 = vadd.f32 %v265, %v219
      %v282 = vadd.f32 %v266, %v224
      %283 = vst [vmem:[#allocation5] sm:$0xff] %v267
      %284 = vst [vmem:[#allocation5 + $0x8] sm:$0xff] %v268
      %285 = vst [vmem:[#allocation5 + $0x10] sm:$0xff] %v269
      %286 = vst [vmem:[#allocation5 + $0x18] sm:$0xff] %v270
      %287 = vst [vmem:[#allocation5 + $0x20] sm:$0xff] %v271
      %288 = vst [vmem:[#allocation5 + $0x28] sm:$0xff] %v272
      %289 = vst [vmem:[#allocation5 + $0x30] sm:$0xff] %v273
      %290 = vst [vmem:[#allocation5 + $0x38] sm:$0xff] %v274
      %291 = vst [vmem:[#allocation5 + $0x40] sm:$0xff] %v275
      %292 = vst [vmem:[#allocation5 + $0x48] sm:$0xff] %v276
      %293 = vst [vmem:[#allocation5 + $0x50] sm:$0xff] %v277
      %294 = vst [vmem:[#allocation5 + $0x58] sm:$0xff] %v278
      %295 = vst [vmem:[#allocation5 + $0x60] sm:$0xff] %v279
      %296 = vst [vmem:[#allocation5 + $0x68] sm:$0xff] %v280
      %297 = vst [vmem:[#allocation5 + $0x70] sm:$0xff] %v281
      %298 = vst [vmem:[#allocation5 + $0x78] sm:$0xff] %v282
    $region29: #{tpu_custom_call.1} parent=1 // pred_fallthru
      _
    // Predicated region
    $region30: #{tpu_custom_call.1} parent=1 // pred_check
      %p299 = pneg %p227
    $region31: #{tpu_custom_call.1} parent=1 // pred_check_branch
      %301 = sbr.rel (%p299) target = $region33
    $region32: #{tpu_custom_call.1} parent=1 // pred_region
      %v302 = vld [vmem:[#allocation5] sm:$0xff]
      %v303 = vld [vmem:[#allocation5 + $0x8] sm:$0xff]
      %v304 = vld [vmem:[#allocation5 + $0x10] sm:$0xff]
      %v305 = vld [vmem:[#allocation5 + $0x18] sm:$0xff]
      %v306 = vld [vmem:[#allocation5 + $0x20] sm:$0xff]
      %v307 = vld [vmem:[#allocation5 + $0x28] sm:$0xff]
      %v308 = vld [vmem:[#allocation5 + $0x30] sm:$0xff]
      %v309 = vld [vmem:[#allocation5 + $0x38] sm:$0xff]
      %v310 = vld [vmem:[#allocation5 + $0x40] sm:$0xff]
      %v311 = vld [vmem:[#allocation5 + $0x48] sm:$0xff]
      %v312 = vld [vmem:[#allocation5 + $0x50] sm:$0xff]
      %v313 = vld [vmem:[#allocation5 + $0x58] sm:$0xff]
      %v314 = vld [vmem:[#allocation5 + $0x60] sm:$0xff]
      %v315 = vld [vmem:[#allocation5 + $0x68] sm:$0xff]
      %v316 = vld [vmem:[#allocation5 + $0x70] sm:$0xff]
      %v317 = vld [vmem:[#allocation5 + $0x78] sm:$0xff]
      %v318 = vld [vmem:[%s3] sm:$0xff]
      %v319 = vld [vmem:[%s3 + $0x8] sm:$0xff]
      %v320 = vld [vmem:[%s3 + $0x10] sm:$0xff]
      %v321 = vld [vmem:[%s3 + $0x18] sm:$0xff]
      %v322 = vld [vmem:[%s3 + $0x20] sm:$0xff]
      %v323 = vld [vmem:[%s3 + $0x28] sm:$0xff]
      %v324 = vld [vmem:[%s3 + $0x30] sm:$0xff]
      %v325 = vld [vmem:[%s3 + $0x38] sm:$0xff]
      %v326 = vld [vmem:[%s3 + $0x40] sm:$0xff]
      %v327 = vld [vmem:[%s3 + $0x48] sm:$0xff]
      %v328 = vld [vmem:[%s3 + $0x50] sm:$0xff]
      %v329 = vld [vmem:[%s3 + $0x58] sm:$0xff]
      %v330 = vld [vmem:[%s3 + $0x60] sm:$0xff]
      %v331 = vld [vmem:[%s3 + $0x68] sm:$0xff]
      %v332 = vld [vmem:[%s3 + $0x70] sm:$0xff]
      %v333 = vld [vmem:[%s3 + $0x78] sm:$0xff]
      %335 = vset.pattern.permute.xlu0 0
      %336 = vperm.xlu0 %335, %v318
      %v337 = vpop.permute.xlu0 %336
      %340 = vset.pattern.permute.xlu0 0
      %341 = vperm.xlu0 %340, %v319
      %v342 = vpop.permute.xlu0 %341
      %345 = vset.pattern.permute.xlu0 0
      %346 = vperm.xlu0 %345, %v320
      %v347 = vpop.permute.xlu0 %346
      %350 = vset.pattern.permute.xlu0 0
      %351 = vperm.xlu0 %350, %v321
      %v352 = vpop.permute.xlu0 %351
      %355 = vset.pattern.permute.xlu0 0
      %356 = vperm.xlu0 %355, %v322
      %v357 = vpop.permute.xlu0 %356
      %360 = vset.pattern.permute.xlu0 0
      %361 = vperm.xlu0 %360, %v323
      %v362 = vpop.permute.xlu0 %361
      %365 = vset.pattern.permute.xlu0 0
      %366 = vperm.xlu0 %365, %v324
      %v367 = vpop.permute.xlu0 %366
      %370 = vset.pattern.permute.xlu0 0
      %371 = vperm.xlu0 %370, %v325
      %v372 = vpop.permute.xlu0 %371
      %375 = vset.pattern.permute.xlu0 0
      %376 = vperm.xlu0 %375, %v326
      %v377 = vpop.permute.xlu0 %376
      %380 = vset.pattern.permute.xlu0 0
      %381 = vperm.xlu0 %380, %v327
      %v382 = vpop.permute.xlu0 %381
      %385 = vset.pattern.permute.xlu0 0
      %386 = vperm.xlu0 %385, %v328
      %v387 = vpop.permute.xlu0 %386
      %390 = vset.pattern.permute.xlu0 0
      %391 = vperm.xlu0 %390, %v329
      %v392 = vpop.permute.xlu0 %391
      %395 = vset.pattern.permute.xlu0 0
      %396 = vperm.xlu0 %395, %v330
      %v397 = vpop.permute.xlu0 %396
      %400 = vset.pattern.permute.xlu0 0
      %401 = vperm.xlu0 %400, %v331
      %v402 = vpop.permute.xlu0 %401
      %405 = vset.pattern.permute.xlu0 0
      %406 = vperm.xlu0 %405, %v332
      %v407 = vpop.permute.xlu0 %406
      %410 = vset.pattern.permute.xlu0 0
      %411 = vperm.xlu0 %410, %v333
      %v412 = vpop.permute.xlu0 %411
      %v414 = vmul.f32 %v302, %v337
      %v415 = vmul.f32 %v303, %v342
      %v416 = vmul.f32 %v304, %v347
      %v417 = vmul.f32 %v305, %v352
      %v418 = vmul.f32 %v306, %v357
      %v419 = vmul.f32 %v307, %v362
      %v420 = vmul.f32 %v308, %v367
      %v421 = vmul.f32 %v309, %v372
      %v422 = vmul.f32 %v310, %v377
      %v423 = vmul.f32 %v311, %v382
      %v424 = vmul.f32 %v312, %v387
      %v425 = vmul.f32 %v313, %v392
      %v426 = vmul.f32 %v314, %v397
      %v427 = vmul.f32 %v315, %v402
      %v428 = vmul.f32 %v316, %v407
      %v429 = vmul.f32 %v317, %v412
      %v430 = vld [vmem:[%s2] sm:$0x1]
      %v432 = vlaneseq
      %v433 = vshrl.u32 %v432, 7
      %v434 = vsub.s32 0, %v433
      %v435 = vrot.slane %v430, %v434
      %v437 = vadd.f32 %v414, %v435
      %v438 = vadd.f32 %v415, %v435
      %v439 = vadd.f32 %v416, %v435
      %v440 = vadd.f32 %v417, %v435
      %v441 = vadd.f32 %v418, %v435
      %v442 = vadd.f32 %v419, %v435
      %v443 = vadd.f32 %v420, %v435
      %v444 = vadd.f32 %v421, %v435
      %v445 = vadd.f32 %v422, %v435
      %v446 = vadd.f32 %v423, %v435
      %v447 = vadd.f32 %v424, %v435
      %v448 = vadd.f32 %v425, %v435
      %v449 = vadd.f32 %v426, %v435
      %v450 = vadd.f32 %v427, %v435
      %v451 = vadd.f32 %v428, %v435
      %v452 = vadd.f32 %v429, %v435
      %453 = vst [vmem:[#allocation5] sm:$0xff] %v437
      %454 = vst [vmem:[#allocation5 + $0x8] sm:$0xff] %v438
      %455 = vst [vmem:[#allocation5 + $0x10] sm:$0xff] %v439
      %456 = vst [vmem:[#allocation5 + $0x18] sm:$0xff] %v440
      %457 = vst [vmem:[#allocation5 + $0x20] sm:$0xff] %v441
      %458 = vst [vmem:[#allocation5 + $0x28] sm:$0xff] %v442
      %459 = vst [vmem:[#allocation5 + $0x30] sm:$0xff] %v443
      %460 = vst [vmem:[#allocation5 + $0x38] sm:$0xff] %v444
      %461 = vst [vmem:[#allocation5 + $0x40] sm:$0xff] %v445
      %462 = vst [vmem:[#allocation5 + $0x48] sm:$0xff] %v446
      %463 = vst [vmem:[#allocation5 + $0x50] sm:$0xff] %v447
      %464 = vst [vmem:[#allocation5 + $0x58] sm:$0xff] %v448
      %465 = vst [vmem:[#allocation5 + $0x60] sm:$0xff] %v449
      %466 = vst [vmem:[#allocation5 + $0x68] sm:$0xff] %v450
      %467 = vst [vmem:[#allocation5 + $0x70] sm:$0xff] %v451
      %468 = vst [vmem:[#allocation5 + $0x78] sm:$0xff] %v452
    $region33: #{tpu_custom_call.1} parent=1 // pred_fallthru
      _
    // Predicated region
    $region34: #{tpu_custom_call.1} parent=1 // pred_check
      _
    $region35: #{tpu_custom_call.1} parent=1 // pred_check_branch
      %470 = sbr.rel (0) target = $region37
    $region36: #{tpu_custom_call.1} parent=1 // pred_region
      %s472 = ssub.s32 2048, 2048
      %473 = vsyncadd [#allocation4], %s472
      %s474 = sshll.u32 [#allocation5], 4
      %s475 = int_to_ptr.vmem [resolvable:$true] %s474
      %480 = dma.vmem_to_hbm [thread:$0]  %s475, 2048, %s4, [#allocation4], 128, 128, 8
    $region37: #{tpu_custom_call.1} parent=1 // pred_fallthru
      _
    // Predicated region
    $region38: #{tpu_custom_call.1} parent=1 // pred_check
      _
    $region39: #{tpu_custom_call.1} parent=1 // pred_check_branch
      %482 = sbr.rel (0) target = $region41
    $region40: #{tpu_custom_call.1} parent=1 // pred_region
      %483 = dma.done [#allocation4], 2048
    $region41: #{tpu_custom_call.1} parent=1 // pred_fallthru
      _
    %484 = vsyncpa [#allocation3], 1
    %485 = vsyncpa [#allocation4], 1

</llo_original>
